<compile_context>
chip_gen: v5e
topology: v5e:2x2
jax: 0.10.0
libtpu: 0.0.40
codegen_flags: <defaults>
</compile_context>

<pallas_src>
import functools

import jax
import jax.numpy as jnp
from jax.experimental import pallas as pl
from jax.experimental.pallas import tpu as pltpu

IN_DIM, H1_DIM, H2_DIM, OUT_DIM = 4, 8, 9, 3
LANES = 128
OUT_PAD = 8          # kernel output width (>= OUT_DIM, small -> cheap HBM writeback)

# Row offsets of each parameter inside the packed (SLAB_ROWS, 128) slab.
# All offsets are multiples of 8 so every slice is (8,128)-tile aligned.
W1_OFF = 0           # rows [0, 4)     : W1 (4x8)   in cols 0..7
B1_OFF = 8           # row  8          : b1 (8,)    in cols 0..7
W2_OFF = 16          # rows [16, 144)  : W2 (8x9)   in rows 0..7 / cols 0..8
B2_OFF = 144         # row  144        : b2 (9,)    in cols 0..8
W3_OFF = 152         # rows [152, 280) : W3 (9x3)   in rows 0..8 / cols 0..2
B3_OFF = 280         # row  280        : b3 (3,)    in cols 0..2
SLAB_ROWS = 288      # 281 used rows rounded up to a multiple of 8 sublanes


def _round_up(n, m):
    return -(-n // m) * m


def mlp_kernel(x_ref, slab_ref, o_ref):
    x = x_ref[...]                                    # (TILE_B, 4)

    w1 = slab_ref[W1_OFF:W1_OFF + IN_DIM, :]          # (4, 128)
    b1 = slab_ref[B1_OFF:B1_OFF + 1, :]               # (1, 128)
    w2 = slab_ref[W2_OFF:W2_OFF + LANES, :]           # (128, 128)
    b2 = slab_ref[B2_OFF:B2_OFF + 1, :]               # (1, 128)
    w3 = slab_ref[W3_OFF:W3_OFF + LANES, :]           # (128, 128)
    b3 = slab_ref[B3_OFF:B3_OFF + 1, :]               # (1, 128)

    h1 = jnp.dot(x, w1, preferred_element_type=jnp.float32) + b1
    h1 = jnp.maximum(h1, 0.0)                         # (TILE_B, 128); lanes >=8 are 0
    h2 = jnp.dot(h1, w2, preferred_element_type=jnp.float32) + b2
    h2 = jnp.maximum(h2, 0.0)                         # (TILE_B, 128); lanes >=9 are 0
    y = jnp.dot(h2, w3, preferred_element_type=jnp.float32) + b3
    # Narrow store: only the first OUT_PAD lanes hit HBM (lanes >= 3 are 0).
    o_ref[...] = y[:, :OUT_PAD].astype(o_ref.dtype)   # (TILE_B, OUT_PAD)


@functools.partial(jax.jit, static_argnames=("tile_b",))
def mlp_forward(x, slab, *, tile_b=2048):
    """x: (B, 4) f32, slab: (SLAB_ROWS, 128) packed params. Returns (B, 3)."""
    B = x.shape[0]
    b8 = _round_up(B, 8)
    # Tile choice: large enough (>=256 rows) to amortize the ~0.35us/step
    # overhead, but small enough that large batches give >= ~8 grid steps so
    # v7x's two TensorCores and BlockSpec double-buffering stay busy.
    tile = max(256, _round_up(pl.cdiv(b8, 8), 8))
    tile = min(tile, tile_b, b8)
    grid_b = pl.cdiv(B, tile)
    b_pad = grid_b * tile
    if b_pad != B:
        # TODO(synk): ragged-tail handling would avoid this extra copy of x;
        # it is minor (<= one tile of padding, 32 B/row on a tiny input).
        x = jnp.pad(x, ((0, b_pad - B), (0, 0)))

    out = pl.pallas_call(
        mlp_kernel,
        out_shape=jax.ShapeDtypeStruct((b_pad, OUT_PAD), jnp.float32),
        grid=(grid_b,),
        in_specs=[
            pl.BlockSpec((tile, IN_DIM), lambda i: (i, 0)),        # x tile, pipelined
            pl.BlockSpec((SLAB_ROWS, LANES), lambda i: (0, 0)),    # slab: fetched once, resident
        ],
        out_specs=pl.BlockSpec((tile, OUT_PAD), lambda i: (i, 0)),  # narrow output block
        compiler_params=pltpu.CompilerParams(
            dimension_semantics=("parallel",)),                    # megacore over batch tiles
    )(x, slab)
    return out[:B, :OUT_DIM]


def init_params(key):
    """nn.Linear-style init (uniform +/- 1/sqrt(fan_in)); weights stored (in, out)."""
    dims = [(IN_DIM, H1_DIM), (H1_DIM, H2_DIM), (H2_DIM, OUT_DIM)]
    weights, biases = [], []
    for fan_in, fan_out in dims:
        key, kw, kb = jax.random.split(key, 3)
        bound = 1.0 / (fan_in ** 0.5)
        weights.append(jax.random.uniform(kw, (fan_in, fan_out), jnp.float32, -bound, bound))
        biases.append(jax.random.uniform(kb, (fan_out,), jnp.float32, -bound, bound))
    return weights, biases


def pack_slab(weights, biases):
    """Pack W1/b1/W2/b2/W3/b3 into one zero-padded (SLAB_ROWS, 128) f32 slab."""
    w1, w2, w3 = weights
    b1, b2, b3 = biases
    slab = jnp.zeros((SLAB_ROWS, LANES), jnp.float32)   # zero padding is load-bearing
    slab = slab.at[W1_OFF:W1_OFF + IN_DIM, :H1_DIM].set(w1)
    slab = slab.at[B1_OFF, :H1_DIM].set(b1)
    slab = slab.at[W2_OFF:W2_OFF + H1_DIM, :H2_DIM].set(w2)
    slab = slab.at[B2_OFF, :H2_DIM].set(b2)
    slab = slab.at[W3_OFF:W3_OFF + H2_DIM, :OUT_DIM].set(w3)
    slab = slab.at[B3_OFF, :OUT_DIM].set(b3)
    return slab


def reference_forward(x, weights, biases):
    w1, w2, w3 = weights
    b1, b2, b3 = biases
    h1 = jnp.maximum(x @ w1 + b1, 0.0)
    h2 = jnp.maximum(h1 @ w2 + b2, 0.0)
    return h2 @ w3 + b3


if __name__ == "__main__":
    key = jax.random.PRNGKey(0)
    weights, biases = init_params(key)
    slab = pack_slab(weights, biases)

    ok = True
    for batch in (1000, 512):          # ragged (exercises padding) + evenly-divided
        key, kx = jax.random.split(key)
        x = jax.random.normal(kx, (batch, IN_DIM), jnp.float32)

        y = mlp_forward(x, slab, tile_b=2048)
        y = jax.block_until_ready(y)

        y_ref = reference_forward(x, weights, biases)
        ok &= y.shape == (batch, OUT_DIM)
        ok &= bool(jnp.allclose(y, y_ref, atol=1e-5, rtol=1e-5))

    assert ok, "mismatch vs reference"
    print("KERNEL_OK")
</pallas_src>

<mosaic_0001>
module attributes {stable_mosaic.version = 11 : i64} {
  func.func @mlp_kernel(%arg0: i32, %arg1: memref<256x4xf32, #tpu.memory_space<vmem>>, %arg2: memref<288x128xf32, #tpu.memory_space<vmem>>, %arg3: memref<256x8xf32, #tpu.memory_space<vmem>>) attributes {dimension_semantics = [#tpu.dimension_semantics<parallel>], iteration_bounds = array<i64: 4>, scalar_prefetch = 0 : i64, scratch_operands = 0 : i64, tpu.core_type = #tpu.core_type<tc>, window_params = [{transform_indices = @transform_0, window_bounds = array<i64: 256, 4>}, {pipeline_mode = #tpu.pipeline_mode<synchronous>, transform_indices = @transform_1, window_bounds = array<i64: 288, 128>}, {transform_indices = @transform_2, window_bounds = array<i64: 256, 8>}]} {
    %c0 = arith.constant 0 : index
    %c0_0 = arith.constant 0 : index
    %0 = vector.load %arg1[%c0, %c0_0] : memref<256x4xf32, #tpu.memory_space<vmem>>, vector<256x4xf32>
    %c0_1 = arith.constant 0 : index
    %c0_2 = arith.constant 0 : index
    %1 = vector.load %arg2[%c0_1, %c0_2] : memref<288x128xf32, #tpu.memory_space<vmem>>, vector<4x128xf32>
    %c8 = arith.constant 8 : index
    %c0_3 = arith.constant 0 : index
    %2 = vector.load %arg2[%c8, %c0_3] : memref<288x128xf32, #tpu.memory_space<vmem>>, vector<1x128xf32>
    %c16 = arith.constant 16 : index
    %c0_4 = arith.constant 0 : index
    %3 = vector.load %arg2[%c16, %c0_4] : memref<288x128xf32, #tpu.memory_space<vmem>>, vector<128x128xf32>
    %c144 = arith.constant 144 : index
    %c0_5 = arith.constant 0 : index
    %4 = vector.load %arg2[%c144, %c0_5] : memref<288x128xf32, #tpu.memory_space<vmem>>, vector<1x128xf32>
    %c152 = arith.constant 152 : index
    %c0_6 = arith.constant 0 : index
    %5 = vector.load %arg2[%c152, %c0_6] : memref<288x128xf32, #tpu.memory_space<vmem>>, vector<128x128xf32>
    %c280 = arith.constant 280 : index
    %c0_7 = arith.constant 0 : index
    %6 = vector.load %arg2[%c280, %c0_7] : memref<288x128xf32, #tpu.memory_space<vmem>>, vector<1x128xf32>
    %cst = arith.constant dense<0.000000e+00> : vector<256x128xf32>
    %7 = tpu.matmul %0, %1, %cst {dimension_numbers = #tpu.dot_dimension_numbers<[1], [0], [0], [1], [0, 0, 1, 1], [], []>} : vector<256x4xf32>, vector<4x128xf32>, vector<256x128xf32> -> vector<256x128xf32>
    %8 = vector.broadcast %2 : vector<1x128xf32> to vector<256x128xf32>
    %9 = arith.addf %7, %8 : vector<256x128xf32>
    %cst_8 = arith.constant 0.000000e+00 : f32
    %10 = vector.broadcast %cst_8 : f32 to vector<256x128xf32>
    %11 = arith.maximumf %9, %10 : vector<256x128xf32>
    %cst_9 = arith.constant dense<0.000000e+00> : vector<256x128xf32>
    %12 = tpu.matmul %11, %3, %cst_9 {dimension_numbers = #tpu.dot_dimension_numbers<[1], [0], [0], [1], [0, 0, 1, 1], [], []>} : vector<256x128xf32>, vector<128x128xf32>, vector<256x128xf32> -> vector<256x128xf32>
    %13 = vector.broadcast %4 : vector<1x128xf32> to vector<256x128xf32>
    %14 = arith.addf %12, %13 : vector<256x128xf32>
    %cst_10 = arith.constant 0.000000e+00 : f32
    %15 = vector.broadcast %cst_10 : f32 to vector<256x128xf32>
    %16 = arith.maximumf %14, %15 : vector<256x128xf32>
    %cst_11 = arith.constant dense<0.000000e+00> : vector<256x128xf32>
    %17 = tpu.matmul %16, %5, %cst_11 {dimension_numbers = #tpu.dot_dimension_numbers<[1], [0], [0], [1], [0, 0, 1, 1], [], []>} : vector<256x128xf32>, vector<128x128xf32>, vector<256x128xf32> -> vector<256x128xf32>
    %18 = vector.broadcast %6 : vector<1x128xf32> to vector<256x128xf32>
    %19 = arith.addf %17, %18 : vector<256x128xf32>
    %20 = vector.extract_strided_slice %19 {offsets = [0, 0], sizes = [256, 8], strides = [1, 1]} : vector<256x128xf32> to vector<256x8xf32>
    %c0_12 = arith.constant 0 : index
    %c0_13 = arith.constant 0 : index
    %21 = vector.load %arg3[%c0_12, %c0_13] : memref<256x8xf32, #tpu.memory_space<vmem>>, vector<256x8xf32>
    tpu.vector_store %arg3[%c0_12, %c0_13], %20 {strides = array<i32>} : memref<256x8xf32, #tpu.memory_space<vmem>>, vector<256x8xf32>,
    return
  }
  func.func @transform_0(%arg0: i32) -> (i32, i32) {
    %c0_i32 = arith.constant 0 : i32
    %c0_i32_0 = arith.constant 0 : i32
    return %arg0, %c0_i32 : i32, i32
  }
  func.func @transform_1(%arg0: i32) -> (i32, i32) {
    %c0_i32 = arith.constant 0 : i32
    %c0_i32_0 = arith.constant 0 : i32
    %c0_i32_1 = arith.constant 0 : i32
    return %c0_i32, %c0_i32_0 : i32, i32
  }
  func.func @transform_2(%arg0: i32) -> (i32, i32) {
    %c0_i32 = arith.constant 0 : i32
    %c0_i32_0 = arith.constant 0 : i32
    return %arg0, %c0_i32 : i32, i32
  }
}

</mosaic_0001>

<llo_original>
// kernel: mlp_forward.1
$region0: #{mlp_forward.1}
  #allocation0 [shape = 'u32[]', space=smem, size = 0x4, offset = 0x4, fixed_abs, tag = 'smem constant byte address 0x4 - core index']
  #allocation1 [shape = 'u32[72,128]{1,0:T(1,128)}', space=vmem, size = 0x9000, scoped, tag = 'internal scratch']
  %s0 = inlined_call_operand.vmem [shape: f32[1024,4], index: 0, kind: input, shape index: {}]
  %s1 = inlined_call_operand.vmem [shape: f32[288,128], index: 1, kind: input, shape index: {}]
  %s2 = inlined_call_operand.vmem [shape: f32[1024,8], index: 2, kind: output, shape index: {}]
  %s3 = sld [smem:[#allocation0]]
  $region41: #{mlp_forward.1} parent=0
    _
  %s5 = ssub.s32 1, %s3
  %s6 = scalar_select 0, %s5, %s3
  loop: start=0, step=1, limit=6
  $region2: #{mlp_forward.1} parent=0 // loop_pre_header
    _
  $region3: #{mlp_forward.1} parent=0 // loop_header
    %s8 = sphi 0, %s12
    %p9 = scmp.ge.s32.totalorder %s8, 6
    %s18 = sphi 0, %s20
    %s21 = sphi 0, %s18
    %s22 = sphi 0, %s21
    %s38 = sphi 0, %s22
    %s42 = sphi 0, %s42
    %s44 = sphi 0, %s42
    %s45 = sphi 0, %s44
    %s59 = sphi 0, %s45
    %s65 = sphi 0, %s67
    %s68 = sphi 0, %s65
    %s69 = sphi 0, %s68
    %s85 = sphi 0, %s69
  $region4: #{mlp_forward.1} parent=0 // loop_header_branch
    %11 = sbr.rel (%p9) target = $region8
  $region5: #{mlp_forward.1} parent=0 // loop_body
    %s13 = ssub.s32 %s8, 1
    %s14 = ssub.s32 %s8, 2
    %s15 = sadd.s32 %s8, 1
    %s16 = ssub.s32 %s8, %s15
    %p17 = scmp.eq.s32.totalorder %s16, 0
    %s19 = sadd.s32 %s18, 1
    %s20 = scalar_select %p17, %s18, %s19
    %p23 = pneg %p17
    %p24 = scmp.eq.s32.totalorder %s8, 3
    %p25 = por %p23, %p24
    %p26 = scmp.ne.s32.totalorder %s18, %s21
    %p27 = scmp.eq.s32.totalorder %s8, 0
    %p28 = por %p26, %p27
    %p29 = scmp.ne.s32.totalorder %s18, %s21
    %p30 = scmp.eq.s32.totalorder %s13, 3
    %p31 = por %p29, %p30
    %p32 = scmp.ne.s32.totalorder %s21, %s22
    %p33 = scmp.eq.s32.totalorder %s13, 0
    %p34 = por %p32, %p33
    %p35 = scmp.ne.s32.totalorder %s21, %s22
    %p36 = scmp.eq.s32.totalorder %s14, 3
    %p37 = por %p35, %p36
    %p39 = scmp.ne.s32.totalorder %s22, %s38
    %p40 = scmp.eq.s32.totalorder %s14, 0
    %p41 = por %p39, %p40
    %s43 = sadd.s32 %s42, 1
    %p46 = scmp.eq.s32.totalorder %s8, 3
    %p47 = scmp.ne.s32.totalorder %s42, %s44
    %p48 = scmp.eq.s32.totalorder %s8, 0
    %p49 = por %p47, %p48
    %p50 = scmp.ne.s32.totalorder %s42, %s44
    %p51 = scmp.eq.s32.totalorder %s13, 3
    %p52 = por %p50, %p51
    %p53 = scmp.ne.s32.totalorder %s44, %s45
    %p54 = scmp.eq.s32.totalorder %s13, 0
    %p55 = por %p53, %p54
    %p56 = scmp.ne.s32.totalorder %s44, %s45
    %p57 = scmp.eq.s32.totalorder %s14, 3
    %p58 = por %p56, %p57
    %p60 = scmp.ne.s32.totalorder %s45, %s59
    %p61 = scmp.eq.s32.totalorder %s14, 0
    %p62 = por %p60, %p61
    %s63 = ssub.s32 %s8, %s15
    %p64 = scmp.eq.s32.totalorder %s63, 0
    %s66 = sadd.s32 %s65, 1
    %s67 = scalar_select %p64, %s65, %s66
    %p70 = pneg %p64
    %p71 = scmp.eq.s32.totalorder %s8, 3
    %p72 = por %p70, %p71
    %p73 = scmp.ne.s32.totalorder %s65, %s68
    %p74 = scmp.eq.s32.totalorder %s8, 0
    %p75 = por %p73, %p74
    %p76 = scmp.ne.s32.totalorder %s65, %s68
    %p77 = scmp.eq.s32.totalorder %s13, 3
    %p78 = por %p76, %p77
    %p79 = scmp.ne.s32.totalorder %s68, %s69
    %p80 = scmp.eq.s32.totalorder %s13, 0
    %p81 = por %p79, %p80
    %p82 = scmp.ne.s32.totalorder %s68, %s69
    %p83 = scmp.eq.s32.totalorder %s14, 3
    %p84 = por %p82, %p83
    %p86 = scmp.ne.s32.totalorder %s69, %s85
    %p87 = scmp.eq.s32.totalorder %s14, 0
    %p88 = por %p86, %p87
    %p89 = scmp.le.s32.totalorder 1, %s8
    %p90 = scmp.lt.s32.totalorder %s8, 5
    %p91 = pnand %p89, %p90
    %p92 = pneg %p91
    // Predicated region
    $region9: #{mlp_forward.1} parent=5 // pred_check
      _
    $region10: #{mlp_forward.1} parent=5 // pred_check_branch
      %94 = sbr.rel (%p91) target = $region12
    $region11: #{mlp_forward.1} parent=5 // pred_region
      %s95 = ssub.s32 %s8, 1
      // Predicated region
      $region13: #{mlp_forward.1} parent=11 // pred_check
        %p96 = pneg %p55
      $region14: #{mlp_forward.1} parent=11 // pred_check_branch
        %98 = sbr.rel (%p96) target = $region16
      $region15: #{mlp_forward.1} parent=11 // pred_region
        _
      $region16: #{mlp_forward.1} parent=11 // pred_fallthru
        _
    $region12: #{mlp_forward.1} parent=5 // pred_fallthru
      _
    %p99 = scmp.lt.s32.totalorder %s8, 4
    // Predicated region
    $region17: #{mlp_forward.1} parent=5 // pred_check
      %p100 = pneg %p99
    $region18: #{mlp_forward.1} parent=5 // pred_check_branch
      %102 = sbr.rel (%p100) target = $region20
    $region19: #{mlp_forward.1} parent=5 // pred_region
      // Predicated region
      $region21: #{mlp_forward.1} parent=19 // pred_check
        %p103 = pneg %p28
      $region22: #{mlp_forward.1} parent=19 // pred_check_branch
        %105 = sbr.rel (%p103) target = $region24
      $region23: #{mlp_forward.1} parent=19 // pred_region
        %s106 = smul.u32 32, %s8
        %p107 = scmp.lt.s32.totalorder %s106, 127
        %s108 = scalar_select %p107, %s106, 127
        %s109 = smul.addr %s108, 8
        %s110 = scalar_lea.vmem %s0, %s109
        %s111 = smul.u32 32, %s8
      $region24: #{mlp_forward.1} parent=19 // pred_fallthru
        _
    $region20: #{mlp_forward.1} parent=5 // pred_fallthru
      _
    %p112 = scmp.le.s32.totalorder 1, %s8
    %p113 = scmp.lt.s32.totalorder %s8, 5
    %p114 = pnand %p112, %p113
    %p115 = pneg %p114
    // Predicated region
    $region25: #{mlp_forward.1} parent=5 // pred_check
      _
    $region26: #{mlp_forward.1} parent=5 // pred_check_branch
      %117 = sbr.rel (%p114) target = $region28
    $region27: #{mlp_forward.1} parent=5 // pred_region
      %s118 = ssub.s32 %s8, 1
      %s119 = smul.u32 32, %s13
      %p120 = scmp.lt.s32.totalorder %s119, 127
      %s121 = scalar_select %p120, %s119, 127
      %s122 = smul.addr %s121, 8
      %s123 = scalar_lea.vmem %s0, %s122
      %p124 = pneg %p34
      %p125 = pneg %p31
      %p126 = pneg %p55
      %p127 = pneg %p52
      %p128 = pneg %p81
      %p129 = pneg %p78
      %s130 = smul.u32 32, %s13
      %p131 = scmp.lt.s32.totalorder %s130, 127
      %s132 = scalar_select %p131, %s130, 127
      %s133 = smul.addr %s132, 8
      %s134 = scalar_lea.vmem %s2, %s133
      %s135 = smul.u32 32, %s13
      %p136 = scmp.lt.s32.totalorder %s135, 127
      %s137 = scalar_select %p136, %s135, 127
      %s138 = smul.addr %s137, 8
      %s139 = scalar_lea.vmem %s0, %s138
      %s140 = smul.u32 32, %s13
      %s141 = smul.u32 32, %s13
      %p142 = scmp.lt.s32.totalorder %s141, 127
      %s143 = scalar_select %p142, %s141, 127
      %s144 = smul.addr %s143, 8
      %s145 = scalar_lea.vmem %s2, %s144
      %s146 = smul.u32 32, %s13
      %v147 = vld [vmem:[%s139] sm:$0xff]
      %v148 = vld [vmem:[%s139 + $0x8] sm:$0xff]
      %v149 = vld [vmem:[%s139 + $0x10] sm:$0xff]
      %v150 = vld [vmem:[%s139 + $0x18] sm:$0xff]
      %v151 = vld [vmem:[%s139 + $0x20] sm:$0xff]
      %v152 = vld [vmem:[%s139 + $0x28] sm:$0xff]
      %v153 = vld [vmem:[%s139 + $0x30] sm:$0xff]
      %v154 = vld [vmem:[%s139 + $0x38] sm:$0xff]
      %v155 = vld [vmem:[%s139 + $0x40] sm:$0xff]
      %v156 = vld [vmem:[%s139 + $0x48] sm:$0xff]
      %v157 = vld [vmem:[%s139 + $0x50] sm:$0xff]
      %v158 = vld [vmem:[%s139 + $0x58] sm:$0xff]
      %v159 = vld [vmem:[%s139 + $0x60] sm:$0xff]
      %v160 = vld [vmem:[%s139 + $0x68] sm:$0xff]
      %v161 = vld [vmem:[%s139 + $0x70] sm:$0xff]
      %v162 = vld [vmem:[%s139 + $0x78] sm:$0xff]
      %v163 = vld [vmem:[%s139 + $0x80] sm:$0xff]
      %v164 = vld [vmem:[%s139 + $0x88] sm:$0xff]
      %v165 = vld [vmem:[%s139 + $0x90] sm:$0xff]
      %v166 = vld [vmem:[%s139 + $0x98] sm:$0xff]
      %v167 = vld [vmem:[%s139 + $0xa0] sm:$0xff]
      %v168 = vld [vmem:[%s139 + $0xa8] sm:$0xff]
      %v169 = vld [vmem:[%s139 + $0xb0] sm:$0xff]
      %v170 = vld [vmem:[%s139 + $0xb8] sm:$0xff]
      %v171 = vld [vmem:[%s139 + $0xc0] sm:$0xff]
      %v172 = vld [vmem:[%s139 + $0xc8] sm:$0xff]
      %v173 = vld [vmem:[%s139 + $0xd0] sm:$0xff]
      %v174 = vld [vmem:[%s139 + $0xd8] sm:$0xff]
      %v175 = vld [vmem:[%s139 + $0xe0] sm:$0xff]
      %v176 = vld [vmem:[%s139 + $0xe8] sm:$0xff]
      %v177 = vld [vmem:[%s139 + $0xf0] sm:$0xff]
      %v178 = vld [vmem:[%s139 + $0xf8] sm:$0xff]
      %v179 = vld [vmem:[%s1] sm:$0xf]
      %v180 = vld [vmem:[%s1 + $0x8] sm:$0x1]
      %v181 = vld [vmem:[%s1 + $0x10] sm:$0xff]
      %v182 = vld [vmem:[%s1 + $0x18] sm:$0xff]
      %v183 = vld [vmem:[%s1 + $0x20] sm:$0xff]
      %v184 = vld [vmem:[%s1 + $0x28] sm:$0xff]
      %v185 = vld [vmem:[%s1 + $0x30] sm:$0xff]
      %v186 = vld [vmem:[%s1 + $0x38] sm:$0xff]
      %v187 = vld [vmem:[%s1 + $0x40] sm:$0xff]
      %v188 = vld [vmem:[%s1 + $0x48] sm:$0xff]
      %v189 = vld [vmem:[%s1 + $0x50] sm:$0xff]
      %v190 = vld [vmem:[%s1 + $0x58] sm:$0xff]
      %v191 = vld [vmem:[%s1 + $0x60] sm:$0xff]
      %v192 = vld [vmem:[%s1 + $0x68] sm:$0xff]
      %v193 = vld [vmem:[%s1 + $0x70] sm:$0xff]
      %v194 = vld [vmem:[%s1 + $0x78] sm:$0xff]
      %v195 = vld [vmem:[%s1 + $0x80] sm:$0xff]
      %v196 = vld [vmem:[%s1 + $0x88] sm:$0xff]
      %v197 = vld [vmem:[%s1 + $0x90] sm:$0x1]
      %v198 = vld [vmem:[%s1 + $0x98] sm:$0xff]
      %v199 = vld [vmem:[%s1 + $0xa0] sm:$0xff]
      %v200 = vld [vmem:[%s1 + $0xa8] sm:$0xff]
      %v201 = vld [vmem:[%s1 + $0xb0] sm:$0xff]
      %v202 = vld [vmem:[%s1 + $0xb8] sm:$0xff]
      %v203 = vld [vmem:[%s1 + $0xc0] sm:$0xff]
      %v204 = vld [vmem:[%s1 + $0xc8] sm:$0xff]
      %v205 = vld [vmem:[%s1 + $0xd0] sm:$0xff]
      %v206 = vld [vmem:[%s1 + $0xd8] sm:$0xff]
      %v207 = vld [vmem:[%s1 + $0xe0] sm:$0xff]
      %v208 = vld [vmem:[%s1 + $0xe8] sm:$0xff]
      %v209 = vld [vmem:[%s1 + $0xf0] sm:$0xff]
      %v210 = vld [vmem:[%s1 + $0xf8] sm:$0xff]
      %v211 = vld [vmem:[%s1 + $0x100] sm:$0xff]
      %v212 = vld [vmem:[%s1 + $0x108] sm:$0xff]
      %v213 = vld [vmem:[%s1 + $0x110] sm:$0xff]
      %v214 = vld [vmem:[%s1 + $0x118] sm:$0x1]
      %v215 = vperm.slane %v180, 0
      %vm216 = vcmask 31744
      %v218 = vsel %vm216, %v147, 0
      %v221 = vsel %vm216, %v148, 0
      %v224 = vsel %vm216, %v149, 0
      %v227 = vsel %vm216, %v150, 0
      %v230 = vsel %vm216, %v151, 0
      %v233 = vsel %vm216, %v152, 0
      %v236 = vsel %vm216, %v153, 0
      %v239 = vsel %vm216, %v154, 0
      %v242 = vsel %vm216, %v155, 0
      %v245 = vsel %vm216, %v156, 0
      %v248 = vsel %vm216, %v157, 0
      %v251 = vsel %vm216, %v158, 0
      %v254 = vsel %vm216, %v159, 0
      %v257 = vsel %vm216, %v160, 0
      %v260 = vsel %vm216, %v161, 0
      %v263 = vsel %vm216, %v162, 0
      %v266 = vsel %vm216, %v163, 0
      %v269 = vsel %vm216, %v164, 0
      %v272 = vsel %vm216, %v165, 0
      %v275 = vsel %vm216, %v166, 0
      %v278 = vsel %vm216, %v167, 0
      %v281 = vsel %vm216, %v168, 0
      %v284 = vsel %vm216, %v169, 0
      %v287 = vsel %vm216, %v170, 0
      %v290 = vsel %vm216, %v171, 0
      %v293 = vsel %vm216, %v172, 0
      %v296 = vsel %vm216, %v173, 0
      %v299 = vsel %vm216, %v174, 0
      %v302 = vsel %vm216, %v175, 0
      %v305 = vsel %vm216, %v176, 0
      %v308 = vsel %vm216, %v177, 0
      %v311 = vsel %vm216, %v178, 0
      %vm313 = vcmask 1043456
      %v315 = vsel %vm313, %v179, 0
      %317 = vmatpush.msra.mxu0 0.0
      %318 = vmatpush.msra.mxu0 0.0
      %319 = vmatpush.msra.mxu0 0.0
      %320 = vmatpush.msra.mxu0 0.0
      %321 = vmatpush.msra.mxu0 0.0
      %322 = vmatpush.msra.mxu0 0.0
      %323 = vmatpush.msra.mxu0 0.0
      %324 = vmatpush.msra.mxu0 0.0
      %325 = vmatpush.msra.mxu0 0.0
      %326 = vmatpush.msra.mxu0 0.0
      %327 = vmatpush.msra.mxu0 0.0
      %328 = vmatpush.msra.mxu0 0.0
      %329 = vmatpush.msra.mxu0 0.0
      %330 = vmatpush.msra.mxu0 0.0
      %331 = vmatpush.msra.mxu0 0.0
      %332 = vmatpush.msra.mxu0 %v315
      %333 = vmatmul.f32.gmra.mxu0 %v218
      %v334 = vpop.f32.mrf.mxu0
      %v335 = vadd.f32 %v215, %v334
      %336 = vmatmul.f32.gmra.mxu0 %v221
      %v337 = vpop.f32.mrf.mxu0
      %v338 = vadd.f32 %v215, %v337
      %339 = vmatmul.f32.gmra.mxu0 %v224
      %v340 = vpop.f32.mrf.mxu0
      %v341 = vadd.f32 %v215, %v340
      %342 = vmatmul.f32.gmra.mxu0 %v227
      %v343 = vpop.f32.mrf.mxu0
      %v344 = vadd.f32 %v215, %v343
      %345 = vmatmul.f32.gmra.mxu0 %v230
      %v346 = vpop.f32.mrf.mxu0
      %v347 = vadd.f32 %v215, %v346
      %348 = vmatmul.f32.gmra.mxu0 %v233
      %v349 = vpop.f32.mrf.mxu0
      %v350 = vadd.f32 %v215, %v349
      %351 = vmatmul.f32.gmra.mxu0 %v236
      %v352 = vpop.f32.mrf.mxu0
      %v353 = vadd.f32 %v215, %v352
      %354 = vmatmul.f32.gmra.mxu0 %v239
      %v355 = vpop.f32.mrf.mxu0
      %v356 = vadd.f32 %v215, %v355
      %357 = vmatmul.f32.gmra.mxu0 %v242
      %v358 = vpop.f32.mrf.mxu0
      %v359 = vadd.f32 %v215, %v358
      %360 = vmatmul.f32.gmra.mxu0 %v245
      %v361 = vpop.f32.mrf.mxu0
      %v362 = vadd.f32 %v215, %v361
      %363 = vmatmul.f32.gmra.mxu0 %v248
      %v364 = vpop.f32.mrf.mxu0
      %v365 = vadd.f32 %v215, %v364
      %366 = vmatmul.f32.gmra.mxu0 %v251
      %v367 = vpop.f32.mrf.mxu0
      %v368 = vadd.f32 %v215, %v367
      %369 = vmatmul.f32.gmra.mxu0 %v254
      %v370 = vpop.f32.mrf.mxu0
      %v371 = vadd.f32 %v215, %v370
      %372 = vmatmul.f32.gmra.mxu0 %v257
      %v373 = vpop.f32.mrf.mxu0
      %v374 = vadd.f32 %v215, %v373
      %375 = vmatmul.f32.gmra.mxu0 %v260
      %v376 = vpop.f32.mrf.mxu0
      %v377 = vadd.f32 %v215, %v376
      %378 = vmatmul.f32.gmra.mxu0 %v263
      %v379 = vpop.f32.mrf.mxu0
      %v380 = vadd.f32 %v215, %v379
      %381 = vmatmul.f32.gmra.mxu0 %v266
      %v382 = vpop.f32.mrf.mxu0
      %v383 = vadd.f32 %v215, %v382
      %384 = vmatmul.f32.gmra.mxu0 %v269
      %v385 = vpop.f32.mrf.mxu0
      %v386 = vadd.f32 %v215, %v385
      %387 = vmatmul.f32.gmra.mxu0 %v272
      %v388 = vpop.f32.mrf.mxu0
      %v389 = vadd.f32 %v215, %v388
      %390 = vmatmul.f32.gmra.mxu0 %v275
      %v391 = vpop.f32.mrf.mxu0
      %v392 = vadd.f32 %v215, %v391
      %393 = vmatmul.f32.gmra.mxu0 %v278
      %v394 = vpop.f32.mrf.mxu0
      %v395 = vadd.f32 %v215, %v394
      %396 = vmatmul.f32.gmra.mxu0 %v281
      %v397 = vpop.f32.mrf.mxu0
      %v398 = vadd.f32 %v215, %v397
      %399 = vmatmul.f32.gmra.mxu0 %v284
      %v400 = vpop.f32.mrf.mxu0
      %v401 = vadd.f32 %v215, %v400
      %402 = vmatmul.f32.gmra.mxu0 %v287
      %v403 = vpop.f32.mrf.mxu0
      %v404 = vadd.f32 %v215, %v403
      %405 = vmatmul.f32.gmra.mxu0 %v290
      %v406 = vpop.f32.mrf.mxu0
      %v407 = vadd.f32 %v215, %v406
      %408 = vmatmul.f32.gmra.mxu0 %v293
      %v409 = vpop.f32.mrf.mxu0
      %v410 = vadd.f32 %v215, %v409
      %411 = vmatmul.f32.gmra.mxu0 %v296
      %v412 = vpop.f32.mrf.mxu0
      %v413 = vadd.f32 %v215, %v412
      %414 = vmatmul.f32.gmra.mxu0 %v299
      %v415 = vpop.f32.mrf.mxu0
      %v416 = vadd.f32 %v215, %v415
      %417 = vmatmul.f32.gmra.mxu0 %v302
      %v418 = vpop.f32.mrf.mxu0
      %v419 = vadd.f32 %v215, %v418
      %420 = vmatmul.f32.gmra.mxu0 %v305
      %v421 = vpop.f32.mrf.mxu0
      %v422 = vadd.f32 %v215, %v421
      %423 = vmatmul.f32.gmra.mxu0 %v308
      %v424 = vpop.f32.mrf.mxu0
      %v425 = vadd.f32 %v215, %v424
      %426 = vmatmul.f32.gmra.mxu0 %v311
      %v427 = vpop.f32.mrf.mxu0
      %v428 = vadd.f32 %v215, %v427
      %429 = vdwg.mxu0
      %v430 = vmax.f32 %v335, 0.0
      %v431 = vmax.f32 %v338, 0.0
      %v432 = vmax.f32 %v341, 0.0
      %v433 = vmax.f32 %v344, 0.0
      %v434 = vmax.f32 %v347, 0.0
      %v435 = vmax.f32 %v350, 0.0
      %v436 = vmax.f32 %v353, 0.0
      %v437 = vmax.f32 %v356, 0.0
      %v438 = vmax.f32 %v359, 0.0
      %v439 = vmax.f32 %v362, 0.0
      %v440 = vmax.f32 %v365, 0.0
      %v441 = vmax.f32 %v368, 0.0
      %v442 = vmax.f32 %v371, 0.0
      %v443 = vmax.f32 %v374, 0.0
      %v444 = vmax.f32 %v377, 0.0
      %v445 = vmax.f32 %v380, 0.0
      %v446 = vmax.f32 %v383, 0.0
      %v447 = vmax.f32 %v386, 0.0
      %v448 = vmax.f32 %v389, 0.0
      %v449 = vmax.f32 %v392, 0.0
      %v450 = vmax.f32 %v395, 0.0
      %v451 = vmax.f32 %v398, 0.0
      %v452 = vmax.f32 %v401, 0.0
      %v453 = vmax.f32 %v404, 0.0
      %v454 = vmax.f32 %v407, 0.0
      %v455 = vmax.f32 %v410, 0.0
      %v456 = vmax.f32 %v413, 0.0
      %v457 = vmax.f32 %v416, 0.0
      %v458 = vmax.f32 %v419, 0.0
      %v459 = vmax.f32 %v422, 0.0
      %v460 = vmax.f32 %v425, 0.0
      %v461 = vmax.f32 %v428, 0.0
      %v462 = vperm.slane %v197, 0
      %463 = vmatpush.msra.mxu0 %v196
      %464 = vmatpush.msra.mxu0 %v195
      %465 = vmatpush.msra.mxu0 %v194
      %466 = vmatpush.msra.mxu0 %v193
      %467 = vmatpush.msra.mxu0 %v192
      %468 = vmatpush.msra.mxu0 %v191
      %469 = vmatpush.msra.mxu0 %v190
      %470 = vmatpush.msra.mxu0 %v189
      %471 = vmatpush.msra.mxu0 %v188
      %472 = vmatpush.msra.mxu0 %v187
      %473 = vmatpush.msra.mxu0 %v186
      %474 = vmatpush.msra.mxu0 %v185
      %475 = vmatpush.msra.mxu0 %v184
      %476 = vmatpush.msra.mxu0 %v183
      %477 = vmatpush.msra.mxu0 %v182
      %478 = vmatpush.msra.mxu0 %v181
      %479 = vmatmul.f32.gmra.mxu0 %v430
      %v480 = vpop.f32.mrf.mxu0
      %v481 = vadd.f32 %v462, %v480
      %482 = vmatmul.f32.gmra.mxu0 %v431
      %v483 = vpop.f32.mrf.mxu0
      %v484 = vadd.f32 %v462, %v483
      %485 = vmatmul.f32.gmra.mxu0 %v432
      %v486 = vpop.f32.mrf.mxu0
      %v487 = vadd.f32 %v462, %v486
      %488 = vmatmul.f32.gmra.mxu0 %v433
      %v489 = vpop.f32.mrf.mxu0
      %v490 = vadd.f32 %v462, %v489
      %491 = vmatmul.f32.gmra.mxu0 %v434
      %v492 = vpop.f32.mrf.mxu0
      %v493 = vadd.f32 %v462, %v492
      %494 = vmatmul.f32.gmra.mxu0 %v435
      %v495 = vpop.f32.mrf.mxu0
      %v496 = vadd.f32 %v462, %v495
      %497 = vmatmul.f32.gmra.mxu0 %v436
      %v498 = vpop.f32.mrf.mxu0
      %v499 = vadd.f32 %v462, %v498
      %500 = vmatmul.f32.gmra.mxu0 %v437
      %v501 = vpop.f32.mrf.mxu0
      %v502 = vadd.f32 %v462, %v501
      %503 = vmatmul.f32.gmra.mxu0 %v438
      %v504 = vpop.f32.mrf.mxu0
      %v505 = vadd.f32 %v462, %v504
      %506 = vmatmul.f32.gmra.mxu0 %v439
      %v507 = vpop.f32.mrf.mxu0
      %v508 = vadd.f32 %v462, %v507
      %509 = vmatmul.f32.gmra.mxu0 %v440
      %v510 = vpop.f32.mrf.mxu0
      %v511 = vadd.f32 %v462, %v510
      %512 = vmatmul.f32.gmra.mxu0 %v441
      %v513 = vpop.f32.mrf.mxu0
      %v514 = vadd.f32 %v462, %v513
      %515 = vmatmul.f32.gmra.mxu0 %v442
      %v516 = vpop.f32.mrf.mxu0
      %v517 = vadd.f32 %v462, %v516
      %518 = vmatmul.f32.gmra.mxu0 %v443
      %v519 = vpop.f32.mrf.mxu0
      %v520 = vadd.f32 %v462, %v519
      %521 = vmatmul.f32.gmra.mxu0 %v444
      %v522 = vpop.f32.mrf.mxu0
      %v523 = vadd.f32 %v462, %v522
      %524 = vmatmul.f32.gmra.mxu0 %v445
      %v525 = vpop.f32.mrf.mxu0
      %v526 = vadd.f32 %v462, %v525
      %527 = vmatmul.f32.gmra.mxu0 %v446
      %v528 = vpop.f32.mrf.mxu0
      %v529 = vadd.f32 %v462, %v528
      %530 = vmatmul.f32.gmra.mxu0 %v447
      %v531 = vpop.f32.mrf.mxu0
      %v532 = vadd.f32 %v462, %v531
      %533 = vmatmul.f32.gmra.mxu0 %v448
      %v534 = vpop.f32.mrf.mxu0
      %v535 = vadd.f32 %v462, %v534
      %536 = vmatmul.f32.gmra.mxu0 %v449
      %v537 = vpop.f32.mrf.mxu0
      %v538 = vadd.f32 %v462, %v537
      %539 = vmatmul.f32.gmra.mxu0 %v450
      %v540 = vpop.f32.mrf.mxu0
      %v541 = vadd.f32 %v462, %v540
      %542 = vmatmul.f32.gmra.mxu0 %v451
      %v543 = vpop.f32.mrf.mxu0
      %v544 = vadd.f32 %v462, %v543
      %545 = vmatmul.f32.gmra.mxu0 %v452
      %v546 = vpop.f32.mrf.mxu0
      %v547 = vadd.f32 %v462, %v546
      %548 = vmatmul.f32.gmra.mxu0 %v453
      %v549 = vpop.f32.mrf.mxu0
      %v550 = vadd.f32 %v462, %v549
      %551 = vmatmul.f32.gmra.mxu0 %v454
      %v552 = vpop.f32.mrf.mxu0
      %v553 = vadd.f32 %v462, %v552
      %554 = vmatmul.f32.gmra.mxu0 %v455
      %v555 = vpop.f32.mrf.mxu0
      %v556 = vadd.f32 %v462, %v555
      %557 = vmatmul.f32.gmra.mxu0 %v456
      %v558 = vpop.f32.mrf.mxu0
      %v559 = vadd.f32 %v462, %v558
      %560 = vmatmul.f32.gmra.mxu0 %v457
      %v561 = vpop.f32.mrf.mxu0
      %v562 = vadd.f32 %v462, %v561
      %563 = vmatmul.f32.gmra.mxu0 %v458
      %v564 = vpop.f32.mrf.mxu0
      %v565 = vadd.f32 %v462, %v564
      %566 = vmatmul.f32.gmra.mxu0 %v459
      %v567 = vpop.f32.mrf.mxu0
      %v568 = vadd.f32 %v462, %v567
      %569 = vmatmul.f32.gmra.mxu0 %v460
      %v570 = vpop.f32.mrf.mxu0
      %v571 = vadd.f32 %v462, %v570
      %572 = vmatmul.f32.gmra.mxu0 %v461
      %v573 = vpop.f32.mrf.mxu0
      %v574 = vadd.f32 %v462, %v573
      %575 = vdwg.mxu0
      %v576 = vmax.f32 %v481, 0.0
      %v577 = vmax.f32 %v484, 0.0
      %v578 = vmax.f32 %v487, 0.0
      %v579 = vmax.f32 %v490, 0.0
      %v580 = vmax.f32 %v493, 0.0
      %v581 = vmax.f32 %v496, 0.0
      %v582 = vmax.f32 %v499, 0.0
      %v583 = vmax.f32 %v502, 0.0
      %v584 = vmax.f32 %v505, 0.0
      %v585 = vmax.f32 %v508, 0.0
      %v586 = vmax.f32 %v511, 0.0
      %v587 = vmax.f32 %v514, 0.0
      %v588 = vmax.f32 %v517, 0.0
      %v589 = vmax.f32 %v520, 0.0
      %v590 = vmax.f32 %v523, 0.0
      %v591 = vmax.f32 %v526, 0.0
      %v592 = vmax.f32 %v529, 0.0
      %v593 = vmax.f32 %v532, 0.0
      %v594 = vmax.f32 %v535, 0.0
      %v595 = vmax.f32 %v538, 0.0
      %v596 = vmax.f32 %v541, 0.0
      %v597 = vmax.f32 %v544, 0.0
      %v598 = vmax.f32 %v547, 0.0
      %v599 = vmax.f32 %v550, 0.0
      %v600 = vmax.f32 %v553, 0.0
      %v601 = vmax.f32 %v556, 0.0
      %v602 = vmax.f32 %v559, 0.0
      %v603 = vmax.f32 %v562, 0.0
      %v604 = vmax.f32 %v565, 0.0
      %v605 = vmax.f32 %v568, 0.0
      %v606 = vmax.f32 %v571, 0.0
      %v607 = vmax.f32 %v574, 0.0
      %v608 = vperm.slane %v214, 0
      %609 = vmatpush.msra.mxu0 %v213
      %610 = vmatpush.msra.mxu0 %v212
      %611 = vmatpush.msra.mxu0 %v211
      %612 = vmatpush.msra.mxu0 %v210
      %613 = vmatpush.msra.mxu0 %v209
      %614 = vmatpush.msra.mxu0 %v208
      %615 = vmatpush.msra.mxu0 %v207
      %616 = vmatpush.msra.mxu0 %v206
      %617 = vmatpush.msra.mxu0 %v205
      %618 = vmatpush.msra.mxu0 %v204
      %619 = vmatpush.msra.mxu0 %v203
      %620 = vmatpush.msra.mxu0 %v202
      %621 = vmatpush.msra.mxu0 %v201
      %622 = vmatpush.msra.mxu0 %v200
      %623 = vmatpush.msra.mxu0 %v199
      %624 = vmatpush.msra.mxu0 %v198
      %625 = vmatmul.f32.gmra.mxu0 %v576
      %v626 = vpop.f32.mrf.mxu0
      %v627 = vadd.f32 %v608, %v626
      %628 = vmatmul.f32.gmra.mxu0 %v577
      %v629 = vpop.f32.mrf.mxu0
      %v630 = vadd.f32 %v608, %v629
      %631 = vmatmul.f32.gmra.mxu0 %v578
      %v632 = vpop.f32.mrf.mxu0
      %v633 = vadd.f32 %v608, %v632
      %634 = vmatmul.f32.gmra.mxu0 %v579
      %v635 = vpop.f32.mrf.mxu0
      %v636 = vadd.f32 %v608, %v635
      %637 = vmatmul.f32.gmra.mxu0 %v580
      %v638 = vpop.f32.mrf.mxu0
      %v639 = vadd.f32 %v608, %v638
      %640 = vmatmul.f32.gmra.mxu0 %v581
      %v641 = vpop.f32.mrf.mxu0
      %v642 = vadd.f32 %v608, %v641
      %643 = vmatmul.f32.gmra.mxu0 %v582
      %v644 = vpop.f32.mrf.mxu0
      %v645 = vadd.f32 %v608, %v644
      %646 = vmatmul.f32.gmra.mxu0 %v583
      %v647 = vpop.f32.mrf.mxu0
      %v648 = vadd.f32 %v608, %v647
      %649 = vmatmul.f32.gmra.mxu0 %v584
      %v650 = vpop.f32.mrf.mxu0
      %v651 = vadd.f32 %v608, %v650
      %652 = vmatmul.f32.gmra.mxu0 %v585
      %v653 = vpop.f32.mrf.mxu0
      %v654 = vadd.f32 %v608, %v653
      %655 = vmatmul.f32.gmra.mxu0 %v586
      %v656 = vpop.f32.mrf.mxu0
      %v657 = vadd.f32 %v608, %v656
      %658 = vmatmul.f32.gmra.mxu0 %v587
      %v659 = vpop.f32.mrf.mxu0
      %v660 = vadd.f32 %v608, %v659
      %661 = vmatmul.f32.gmra.mxu0 %v588
      %v662 = vpop.f32.mrf.mxu0
      %v663 = vadd.f32 %v608, %v662
      %664 = vmatmul.f32.gmra.mxu0 %v589
      %v665 = vpop.f32.mrf.mxu0
      %v666 = vadd.f32 %v608, %v665
      %667 = vmatmul.f32.gmra.mxu0 %v590
      %v668 = vpop.f32.mrf.mxu0
      %v669 = vadd.f32 %v608, %v668
      %670 = vmatmul.f32.gmra.mxu0 %v591
      %v671 = vpop.f32.mrf.mxu0
      %v672 = vadd.f32 %v608, %v671
      %673 = vmatmul.f32.gmra.mxu0 %v592
      %v674 = vpop.f32.mrf.mxu0
      %v675 = vadd.f32 %v608, %v674
      %676 = vmatmul.f32.gmra.mxu0 %v593
      %v677 = vpop.f32.mrf.mxu0
      %v678 = vadd.f32 %v608, %v677
      %679 = vmatmul.f32.gmra.mxu0 %v594
      %v680 = vpop.f32.mrf.mxu0
      %v681 = vadd.f32 %v608, %v680
      %682 = vmatmul.f32.gmra.mxu0 %v595
      %v683 = vpop.f32.mrf.mxu0
      %v684 = vadd.f32 %v608, %v683
      %685 = vmatmul.f32.gmra.mxu0 %v596
      %v686 = vpop.f32.mrf.mxu0
      %v687 = vadd.f32 %v608, %v686
      %688 = vmatmul.f32.gmra.mxu0 %v597
      %v689 = vpop.f32.mrf.mxu0
      %v690 = vadd.f32 %v608, %v689
      %691 = vmatmul.f32.gmra.mxu0 %v598
      %v692 = vpop.f32.mrf.mxu0
      %v693 = vadd.f32 %v608, %v692
      %694 = vmatmul.f32.gmra.mxu0 %v599
      %v695 = vpop.f32.mrf.mxu0
      %v696 = vadd.f32 %v608, %v695
      %697 = vmatmul.f32.gmra.mxu0 %v600
      %v698 = vpop.f32.mrf.mxu0
      %v699 = vadd.f32 %v608, %v698
      %700 = vmatmul.f32.gmra.mxu0 %v601
      %v701 = vpop.f32.mrf.mxu0
      %v702 = vadd.f32 %v608, %v701
      %703 = vmatmul.f32.gmra.mxu0 %v602
      %v704 = vpop.f32.mrf.mxu0
      %v705 = vadd.f32 %v608, %v704
      %706 = vmatmul.f32.gmra.mxu0 %v603
      %v707 = vpop.f32.mrf.mxu0
      %v708 = vadd.f32 %v608, %v707
      %709 = vmatmul.f32.gmra.mxu0 %v604
      %v710 = vpop.f32.mrf.mxu0
      %v711 = vadd.f32 %v608, %v710
      %712 = vmatmul.f32.gmra.mxu0 %v605
      %v713 = vpop.f32.mrf.mxu0
      %v714 = vadd.f32 %v608, %v713
      %715 = vmatmul.f32.gmra.mxu0 %v606
      %v716 = vpop.f32.mrf.mxu0
      %v717 = vadd.f32 %v608, %v716
      %718 = vmatmul.f32.gmra.mxu0 %v607
      %v719 = vpop.f32.mrf.mxu0
      %v720 = vadd.f32 %v608, %v719
      %721 = vdwg.mxu0
      %vm722 = vcmask 64512
      %723 = vst.msk [vmem:[%s145] sm:$0xff] %vm722, %v627
      %724 = vst.msk [vmem:[%s145 + $0x8] sm:$0xff] %vm722, %v630
      %725 = vst.msk [vmem:[%s145 + $0x10] sm:$0xff] %vm722, %v633
      %726 = vst.msk [vmem:[%s145 + $0x18] sm:$0xff] %vm722, %v636
      %727 = vst.msk [vmem:[%s145 + $0x20] sm:$0xff] %vm722, %v639
      %728 = vst.msk [vmem:[%s145 + $0x28] sm:$0xff] %vm722, %v642
      %729 = vst.msk [vmem:[%s145 + $0x30] sm:$0xff] %vm722, %v645
      %730 = vst.msk [vmem:[%s145 + $0x38] sm:$0xff] %vm722, %v648
      %731 = vst.msk [vmem:[%s145 + $0x40] sm:$0xff] %vm722, %v651
      %732 = vst.msk [vmem:[%s145 + $0x48] sm:$0xff] %vm722, %v654
      %733 = vst.msk [vmem:[%s145 + $0x50] sm:$0xff] %vm722, %v657
      %734 = vst.msk [vmem:[%s145 + $0x58] sm:$0xff] %vm722, %v660
      %735 = vst.msk [vmem:[%s145 + $0x60] sm:$0xff] %vm722, %v663
      %736 = vst.msk [vmem:[%s145 + $0x68] sm:$0xff] %vm722, %v666
      %737 = vst.msk [vmem:[%s145 + $0x70] sm:$0xff] %vm722, %v669
      %738 = vst.msk [vmem:[%s145 + $0x78] sm:$0xff] %vm722, %v672
      %739 = vst.msk [vmem:[%s145 + $0x80] sm:$0xff] %vm722, %v675
      %740 = vst.msk [vmem:[%s145 + $0x88] sm:$0xff] %vm722, %v678
      %741 = vst.msk [vmem:[%s145 + $0x90] sm:$0xff] %vm722, %v681
      %742 = vst.msk [vmem:[%s145 + $0x98] sm:$0xff] %vm722, %v684
      %743 = vst.msk [vmem:[%s145 + $0xa0] sm:$0xff] %vm722, %v687
      %744 = vst.msk [vmem:[%s145 + $0xa8] sm:$0xff] %vm722, %v690
      %745 = vst.msk [vmem:[%s145 + $0xb0] sm:$0xff] %vm722, %v693
      %746 = vst.msk [vmem:[%s145 + $0xb8] sm:$0xff] %vm722, %v696
      %747 = vst.msk [vmem:[%s145 + $0xc0] sm:$0xff] %vm722, %v699
      %748 = vst.msk [vmem:[%s145 + $0xc8] sm:$0xff] %vm722, %v702
      %749 = vst.msk [vmem:[%s145 + $0xd0] sm:$0xff] %vm722, %v705
      %750 = vst.msk [vmem:[%s145 + $0xd8] sm:$0xff] %vm722, %v708
      %751 = vst.msk [vmem:[%s145 + $0xe0] sm:$0xff] %vm722, %v711
      %752 = vst.msk [vmem:[%s145 + $0xe8] sm:$0xff] %vm722, %v714
      %753 = vst.msk [vmem:[%s145 + $0xf0] sm:$0xff] %vm722, %v717
      %754 = vst.msk [vmem:[%s145 + $0xf8] sm:$0xff] %vm722, %v720
      %s755 = smul.u32 32, %s13
      %p756 = scmp.lt.s32.totalorder %s755, 127
      %s757 = scalar_select %p756, %s755, 127
      %s758 = smul.addr %s757, 8
      %s759 = scalar_lea.vmem %s2, %s758
      // Predicated region
      $region29: #{mlp_forward.1} parent=27 // pred_check
        %p760 = pneg %p78
      $region30: #{mlp_forward.1} parent=27 // pred_check_branch
        %762 = sbr.rel (%p760) target = $region32
      $region31: #{mlp_forward.1} parent=27 // pred_region
        %s763 = smul.u32 32, %s13
      $region32: #{mlp_forward.1} parent=27 // pred_fallthru
        _
    $region28: #{mlp_forward.1} parent=5 // pred_fallthru
      _
    %p764 = scmp.le.s32.totalorder 2, %s8
    // Predicated region
    $region33: #{mlp_forward.1} parent=5 // pred_check
      %p765 = pneg %p764
    $region34: #{mlp_forward.1} parent=5 // pred_check_branch
      %767 = sbr.rel (%p765) target = $region36
    $region35: #{mlp_forward.1} parent=5 // pred_region
      %s768 = ssub.s32 %s8, 2
      // Predicated region
      $region37: #{mlp_forward.1} parent=35 // pred_check
        %p769 = pneg %p84
      $region38: #{mlp_forward.1} parent=35 // pred_check_branch
        %771 = sbr.rel (%p769) target = $region40
      $region39: #{mlp_forward.1} parent=35 // pred_region
        %s772 = smul.u32 32, %s14
        %p773 = scmp.lt.s32.totalorder %s772, 127
        %s774 = scalar_select %p773, %s772, 127
        %s775 = smul.addr %s774, 8
        %s776 = scalar_lea.vmem %s2, %s775
      $region40: #{mlp_forward.1} parent=35 // pred_fallthru
        _
    $region36: #{mlp_forward.1} parent=5 // pred_fallthru
      _
  $region6: #{mlp_forward.1} parent=0 // loop_footer
    %s12 = sadd.s32 1, %s8
  $region7: #{mlp_forward.1} parent=0 // loop_footer_branch
    %7 = sbr.rel target = $region3
  $region8: #{mlp_forward.1} parent=0 // loop_exit
    _

</llo_original>
